<compile_context>
chip_gen: v6e
topology: v6e:2x2x1
jax: 0.10.0
libtpu: 0.0.40
codegen_flags: <defaults>
</compile_context>

<pallas_src>
import numpy as np

import jax
import jax.numpy as jnp
from jax import lax
from jax.experimental import pallas as pl
from jax.experimental.pallas import tpu as pltpu

WINDOW = 11
SIGMA = 1.5
PAD = WINDOW // 2
DATA_RANGE = 1.0
K1, K2 = 0.01, 0.03
C1 = (K1 * DATA_RANGE) ** 2
C2 = (K2 * DATA_RANGE) ** 2

LANE = 128     # TPU lane width  (last dim)
SUBLANE = 8    # TPU sublane width (second-to-last dim)


def _gaussian_1d(window_size: int, sigma: float) -> np.ndarray:
    coords = np.arange(window_size, dtype=np.float64) - window_size // 2
    g = np.exp(-(coords ** 2) / (2.0 * sigma ** 2))
    return (g / g.sum()).astype(np.float32)


GAUSS = _gaussian_1d(WINDOW, SIGMA)


def _band_matrix(n: int) -> np.ndarray:
    """(n, n) banded Gaussian matrix B with B[i, j] = G[j - i + PAD] for |i - j| <= PAD.

    `x @ B` == 1-D "same" Gaussian conv (zero padded) along the last axis of x,
    `B @ x` == the same along the first axis (B is symmetric).  Band truncation at
    the matrix edges reproduces F.conv2d(padding=PAD)'s zero padding exactly.
    """
    m = np.zeros((n, n), dtype=np.float32)
    for i in range(n):
        for j in range(max(0, i - PAD), min(n, i + PAD + 1)):
            m[i, j] = GAUSS[j - i + PAD]
    return m


def _round_up(v: int, m: int) -> int:
    return (v + m - 1) // m * m


def _make_kernel(h: int, w: int, hp: int, wp: int):
    """Build the per-image SSIM kernel (h/w = valid sizes, hp/wp = aligned block sizes)."""

    def kernel(scale_ref, x_ref, y_ref, bh_ref, bw_ref, out_ref):
        mn = scale_ref[0]        # target min
        inv = scale_ref[1]       # 1 / (max - min)

        x = x_ref[0]             # (hp, wp) f32
        y = y_ref[0]

        # Valid-pixel mask for the lane/sublane alignment padding.
        rows = lax.broadcasted_iota(jnp.int32, (hp, wp), 0)
        cols = lax.broadcasted_iota(jnp.int32, (hp, wp), 1)
        valid = (rows < h) & (cols < w)

        # Fused normalization + clamp; re-zero the padded region so the banded matmul
        # exactly reproduces the zero-padded "same" convolution.
        xn = jnp.clip((x - mn) * inv, 0.0, 1.0)
        yn = jnp.clip((y - mn) * inv, 0.0, 1.0)
        xn = jnp.where(valid, xn, 0.0)
        yn = jnp.where(valid, yn, 0.0)

        # Stack the 5 planes along sublanes: one MXU matmul performs the W-axis
        # Gaussian pass for all of them at once.
        planes = jnp.concatenate([xn, yn, xn * xn, yn * yn, xn * yn], axis=0)  # (5*hp, wp)
        bw = bw_ref[...]          # (wp, wp) banded Gaussian
        bh = bh_ref[...]          # (hp, hp) banded Gaussian
        sw = jnp.dot(planes, bw, preferred_element_type=jnp.float32)           # (5*hp, wp)

        # H-axis pass: one small MXU matmul per plane (statically unrolled).
        conv = [
            jnp.dot(bh, sw[p * hp:(p + 1) * hp, :], preferred_element_type=jnp.float32)
            for p in range(5)
        ]
        mu1, mu2, e_xx, e_yy, e_xy = conv

        mu1_sq = mu1 * mu1
        mu2_sq = mu2 * mu2
        mu1_mu2 = mu1 * mu2
        sigma1_sq = e_xx - mu1_sq
        sigma2_sq = e_yy - mu2_sq
        sigma12 = e_xy - mu1_mu2

        ssim_num = (2.0 * mu1_mu2 + C1) * (2.0 * sigma12 + C2)
        ssim_den = (mu1_sq + mu2_sq + C1) * (sigma1_sq + sigma2_sq + C2)
        ssim_map = ssim_num / ssim_den     # exact divide (tolerance-safe)

        # Partial sum over the valid region only; broadcast into a lane-dense block.
        psum = jnp.sum(jnp.where(valid, ssim_map, 0.0))
        out_ref[...] = jnp.full((1, SUBLANE, LANE), psum, jnp.float32)

    return kernel


@jax.jit
def ssim_loss(input_depth, target_depth):
    """Forward pass of SSIMLoss (no mask, matching spatial sizes): 1 - mean(SSIM)."""
    x = input_depth.astype(jnp.float32)
    y = target_depth.astype(jnp.float32)
    if x.ndim == 3:
        x = x[:, None]
    if y.ndim == 3:
        y = y[:, None]
    # TODO(synk): bilinear interpolate(align_corners=True) when spatial sizes differ
    #             and the optional boolean `mask` (masked mean) path are not implemented.

    b, c, h, w = x.shape
    n = b * c

    # Target-range normalization scalars (one cheap reduction pass over y in JAX;
    # the per-pixel normalize/clamp happens inside the kernel).
    mn = jnp.min(y)
    mx = jnp.max(y)
    inv = 1.0 / (mx - mn)
    scale = jnp.stack([mn, inv]).astype(jnp.float32)        # (2,) -> SMEM

    # Lane/sublane alignment only (no 11-tap halo padding is ever materialized).
    hp = _round_up(max(h, SUBLANE), SUBLANE)
    wp = _round_up(max(w, LANE), LANE)

    xf = x.reshape(n, h, w)
    yf = y.reshape(n, h, w)   # depthwise conv with shared kernel => fold C into batch
    if (hp, wp) != (h, w):
        xf = jnp.pad(xf, ((0, 0), (0, hp - h), (0, wp - w)))
        yf = jnp.pad(yf, ((0, 0), (0, hp - h), (0, wp - w)))

    band_h = jnp.asarray(_band_matrix(hp))   # (hp, hp)
    band_w = jnp.asarray(_band_matrix(wp))   # (wp, wp)

    kernel = _make_kernel(h, w, hp, wp)

    partial = pl.pallas_call(
        kernel,
        out_shape=jax.ShapeDtypeStruct((n, SUBLANE, LANE), jnp.float32),
        grid=(n,),
        in_specs=[
            pl.BlockSpec((2,), lambda i: (0,),
                         memory_space=pltpu.MemorySpace.SMEM),      # [mn, 1/(mx-mn)]
            pl.BlockSpec((1, hp, wp), lambda i: (i, 0, 0)),         # x image block
            pl.BlockSpec((1, hp, wp), lambda i: (i, 0, 0)),         # y image block
            pl.BlockSpec((hp, hp), lambda i: (0, 0)),               # banded Gaussian (H)
            pl.BlockSpec((wp, wp), lambda i: (0, 0)),               # banded Gaussian (W)
        ],
        out_specs=pl.BlockSpec((1, SUBLANE, LANE), lambda i: (i, 0, 0)),
        compiler_params=pltpu.CompilerParams(
            dimension_semantics=("parallel",),        # v7x: split images across both TCs
            vmem_limit_bytes=48 * 1024 * 1024,        # within every generation's physical VMEM
        ),
    )(scale, xf, yf, band_h, band_w)

    total = jnp.sum(partial[:, 0, 0])
    return 1.0 - total / float(n * h * w)


def _ssim_loss_reference(input_depth, target_depth):
    """Pure-JAX reference using an explicit 2D conv (sanity check)."""
    x = input_depth.astype(jnp.float32)
    y = target_depth.astype(jnp.float32)
    mn, mx = jnp.min(y), jnp.max(y)
    xn = jnp.clip((x - mn) / (mx - mn), 0.0, 1.0)
    yn = jnp.clip((y - mn) / (mx - mn), 0.0, 1.0)

    g = jnp.asarray(GAUSS)
    k2d = jnp.outer(g, g)[None, None]   # (1,1,11,11), channels=1

    def conv(a):
        return lax.conv_general_dilated(
            a, k2d, window_strides=(1, 1), padding=[(PAD, PAD), (PAD, PAD)],
            dimension_numbers=("NCHW", "OIHW", "NCHW"),
            precision=lax.Precision.HIGHEST)

    mu1, mu2 = conv(xn), conv(yn)
    s1 = conv(xn * xn) - mu1 * mu1
    s2 = conv(yn * yn) - mu2 * mu2
    s12 = conv(xn * yn) - mu1 * mu2
    ssim_map = ((2 * mu1 * mu2 + C1) * (2 * s12 + C2)) / (
        (mu1 * mu1 + mu2 * mu2 + C1) * (s1 + s2 + C2))
    return 1.0 - jnp.mean(ssim_map)


if __name__ == "__main__":
    key = jax.random.PRNGKey(0)
    k1, k2 = jax.random.split(key)
    B, C, H, W = 2, 1, 16, 16   # depth maps: (B, 1, H, W)
    input_depth = jax.random.uniform(k1, (B, C, H, W), jnp.float32, 0.1, 5.0)
    target_depth = jax.random.uniform(k2, (B, C, H, W), jnp.float32, 0.1, 5.0)

    loss = ssim_loss(input_depth, target_depth)
    jax.block_until_ready(loss)

    ref = _ssim_loss_reference(input_depth, target_depth)
    jax.block_until_ready(ref)
    np.testing.assert_allclose(np.asarray(loss), np.asarray(ref), rtol=1e-3, atol=1e-4)

    print("KERNEL_OK")
</pallas_src>

<mosaic_0001>
module attributes {stable_mosaic.version = 11 : i64} {
  func.func @kernel(%arg0: i32, %arg1: memref<2xf32, #tpu.memory_space<smem>>, %arg2: memref<1x16x128xf32, #tpu.memory_space<vmem>>, %arg3: memref<1x16x128xf32, #tpu.memory_space<vmem>>, %arg4: memref<16x16xf32, #tpu.memory_space<vmem>>, %arg5: memref<128x128xf32, #tpu.memory_space<vmem>>, %arg6: memref<1x8x128xf32, #tpu.memory_space<vmem>>) attributes {dimension_semantics = [#tpu.dimension_semantics<parallel>], iteration_bounds = array<i64: 2>, scalar_prefetch = 0 : i64, scratch_operands = 0 : i64, tpu.core_type = #tpu.core_type<tc>, window_params = [{transform_indices = @transform_0, window_bounds = array<i64: 2>}, {transform_indices = @transform_1, window_bounds = array<i64: 1, 16, 128>}, {transform_indices = @transform_2, window_bounds = array<i64: 1, 16, 128>}, {pipeline_mode = #tpu.pipeline_mode<synchronous>, transform_indices = @transform_3, window_bounds = array<i64: 16, 16>}, {pipeline_mode = #tpu.pipeline_mode<synchronous>, transform_indices = @transform_4, window_bounds = array<i64: 128, 128>}, {transform_indices = @transform_5, window_bounds = array<i64: 1, 8, 128>}]} {
    %c0 = arith.constant 0 : index
    %0 = memref.load %arg1[%c0] : memref<2xf32, #tpu.memory_space<smem>>
    %c1 = arith.constant 1 : index
    %1 = memref.load %arg1[%c1] : memref<2xf32, #tpu.memory_space<smem>>
    %c0_0 = arith.constant 0 : index
    %c0_1 = arith.constant 0 : index
    %c0_2 = arith.constant 0 : index
    %2 = vector.load %arg2[%c0_0, %c0_1, %c0_2] : memref<1x16x128xf32, #tpu.memory_space<vmem>>, vector<1x16x128xf32>
    %3 = vector.shape_cast %2 : vector<1x16x128xf32> to vector<16x128xf32>
    %c0_3 = arith.constant 0 : index
    %c0_4 = arith.constant 0 : index
    %c0_5 = arith.constant 0 : index
    %4 = vector.load %arg3[%c0_3, %c0_4, %c0_5] : memref<1x16x128xf32, #tpu.memory_space<vmem>>, vector<1x16x128xf32>
    %5 = vector.shape_cast %4 : vector<1x16x128xf32> to vector<16x128xf32>
    %6 = tpu.iota {dimensions = array<i32: 0>} : vector<16x128xi32>
    %7 = tpu.iota {dimensions = array<i32: 1>} : vector<16x128xi32>
    %c16_i32 = arith.constant 16 : i32
    %8 = vector.broadcast %c16_i32 : i32 to vector<16x128xi32>
    %9 = arith.cmpi slt, %6, %8 : vector<16x128xi32>
    %c16_i32_6 = arith.constant 16 : i32
    %10 = vector.broadcast %c16_i32_6 : i32 to vector<16x128xi32>
    %11 = arith.cmpi slt, %7, %10 : vector<16x128xi32>
    %12 = arith.andi %9, %11 : vector<16x128xi1>
    %13 = vector.broadcast %0 : f32 to vector<16x128xf32>
    %14 = arith.subf %3, %13 : vector<16x128xf32>
    %15 = vector.broadcast %1 : f32 to vector<16x128xf32>
    %16 = arith.mulf %14, %15 : vector<16x128xf32>
    %cst = arith.constant 0.000000e+00 : f32
    %cst_7 = arith.constant 1.000000e+00 : f32
    %17 = vector.broadcast %cst : f32 to vector<16x128xf32>
    %18 = arith.maximumf %17, %16 : vector<16x128xf32>
    %19 = vector.broadcast %cst_7 : f32 to vector<16x128xf32>
    %20 = arith.minimumf %19, %18 : vector<16x128xf32>
    %21 = vector.broadcast %0 : f32 to vector<16x128xf32>
    %22 = arith.subf %5, %21 : vector<16x128xf32>
    %23 = vector.broadcast %1 : f32 to vector<16x128xf32>
    %24 = arith.mulf %22, %23 : vector<16x128xf32>
    %cst_8 = arith.constant 0.000000e+00 : f32
    %cst_9 = arith.constant 1.000000e+00 : f32
    %25 = vector.broadcast %cst_8 : f32 to vector<16x128xf32>
    %26 = arith.maximumf %25, %24 : vector<16x128xf32>
    %27 = vector.broadcast %cst_9 : f32 to vector<16x128xf32>
    %28 = arith.minimumf %27, %26 : vector<16x128xf32>
    %cst_10 = arith.constant 0.000000e+00 : f32
    %29 = vector.broadcast %cst_10 : f32 to vector<16x128xf32>
    %30 = arith.select %12, %20, %29 : vector<16x128xi1>, vector<16x128xf32>
    %cst_11 = arith.constant 0.000000e+00 : f32
    %31 = vector.broadcast %cst_11 : f32 to vector<16x128xf32>
    %32 = arith.select %12, %28, %31 : vector<16x128xi1>, vector<16x128xf32>
    %33 = arith.mulf %30, %30 : vector<16x128xf32>
    %34 = arith.mulf %32, %32 : vector<16x128xf32>
    %35 = arith.mulf %30, %32 : vector<16x128xf32>
    %36 = tpu.concatenate %30, %32, %33, %34, %35 in 0 : vector<16x128xf32>, vector<16x128xf32>, vector<16x128xf32>, vector<16x128xf32>, vector<16x128xf32> -> vector<80x128xf32>
    %c0_12 = arith.constant 0 : index
    %c0_13 = arith.constant 0 : index
    %37 = vector.load %arg5[%c0_12, %c0_13] : memref<128x128xf32, #tpu.memory_space<vmem>>, vector<128x128xf32>
    %c0_14 = arith.constant 0 : index
    %c0_15 = arith.constant 0 : index
    %38 = vector.load %arg4[%c0_14, %c0_15] : memref<16x16xf32, #tpu.memory_space<vmem>>, vector<16x16xf32>
    %cst_16 = arith.constant dense<0.000000e+00> : vector<80x128xf32>
    %39 = tpu.matmul %36, %37, %cst_16 {dimension_numbers = #tpu.dot_dimension_numbers<[1], [0], [0], [1], [0, 0, 1, 1], [], []>} : vector<80x128xf32>, vector<128x128xf32>, vector<80x128xf32> -> vector<80x128xf32>
    %40 = vector.extract_strided_slice %39 {offsets = [0, 0], sizes = [16, 128], strides = [1, 1]} : vector<80x128xf32> to vector<16x128xf32>
    %cst_17 = arith.constant dense<0.000000e+00> : vector<16x128xf32>
    %41 = tpu.matmul %38, %40, %cst_17 {dimension_numbers = #tpu.dot_dimension_numbers<[1], [0], [0], [1], [0, 0, 1, 1], [], []>} : vector<16x16xf32>, vector<16x128xf32>, vector<16x128xf32> -> vector<16x128xf32>
    %42 = vector.extract_strided_slice %39 {offsets = [16, 0], sizes = [16, 128], strides = [1, 1]} : vector<80x128xf32> to vector<16x128xf32>
    %cst_18 = arith.constant dense<0.000000e+00> : vector<16x128xf32>
    %43 = tpu.matmul %38, %42, %cst_18 {dimension_numbers = #tpu.dot_dimension_numbers<[1], [0], [0], [1], [0, 0, 1, 1], [], []>} : vector<16x16xf32>, vector<16x128xf32>, vector<16x128xf32> -> vector<16x128xf32>
    %44 = vector.extract_strided_slice %39 {offsets = [32, 0], sizes = [16, 128], strides = [1, 1]} : vector<80x128xf32> to vector<16x128xf32>
    %cst_19 = arith.constant dense<0.000000e+00> : vector<16x128xf32>
    %45 = tpu.matmul %38, %44, %cst_19 {dimension_numbers = #tpu.dot_dimension_numbers<[1], [0], [0], [1], [0, 0, 1, 1], [], []>} : vector<16x16xf32>, vector<16x128xf32>, vector<16x128xf32> -> vector<16x128xf32>
    %46 = vector.extract_strided_slice %39 {offsets = [48, 0], sizes = [16, 128], strides = [1, 1]} : vector<80x128xf32> to vector<16x128xf32>
    %cst_20 = arith.constant dense<0.000000e+00> : vector<16x128xf32>
    %47 = tpu.matmul %38, %46, %cst_20 {dimension_numbers = #tpu.dot_dimension_numbers<[1], [0], [0], [1], [0, 0, 1, 1], [], []>} : vector<16x16xf32>, vector<16x128xf32>, vector<16x128xf32> -> vector<16x128xf32>
    %48 = vector.extract_strided_slice %39 {offsets = [64, 0], sizes = [16, 128], strides = [1, 1]} : vector<80x128xf32> to vector<16x128xf32>
    %cst_21 = arith.constant dense<0.000000e+00> : vector<16x128xf32>
    %49 = tpu.matmul %38, %48, %cst_21 {dimension_numbers = #tpu.dot_dimension_numbers<[1], [0], [0], [1], [0, 0, 1, 1], [], []>} : vector<16x16xf32>, vector<16x128xf32>, vector<16x128xf32> -> vector<16x128xf32>
    %50 = arith.mulf %41, %41 : vector<16x128xf32>
    %51 = arith.mulf %43, %43 : vector<16x128xf32>
    %52 = arith.mulf %41, %43 : vector<16x128xf32>
    %53 = arith.subf %45, %50 : vector<16x128xf32>
    %54 = arith.subf %47, %51 : vector<16x128xf32>
    %55 = arith.subf %49, %52 : vector<16x128xf32>
    %cst_22 = arith.constant 2.000000e+00 : f32
    %56 = vector.broadcast %cst_22 : f32 to vector<16x128xf32>
    %57 = arith.mulf %56, %52 : vector<16x128xf32>
    %cst_23 = arith.constant 9.99999974E-5 : f32
    %58 = vector.broadcast %cst_23 : f32 to vector<16x128xf32>
    %59 = arith.addf %57, %58 : vector<16x128xf32>
    %cst_24 = arith.constant 2.000000e+00 : f32
    %60 = vector.broadcast %cst_24 : f32 to vector<16x128xf32>
    %61 = arith.mulf %60, %55 : vector<16x128xf32>
    %cst_25 = arith.constant 8.99999984E-4 : f32
    %62 = vector.broadcast %cst_25 : f32 to vector<16x128xf32>
    %63 = arith.addf %61, %62 : vector<16x128xf32>
    %64 = arith.mulf %59, %63 : vector<16x128xf32>
    %65 = arith.addf %50, %51 : vector<16x128xf32>
    %cst_26 = arith.constant 9.99999974E-5 : f32
    %66 = vector.broadcast %cst_26 : f32 to vector<16x128xf32>
    %67 = arith.addf %65, %66 : vector<16x128xf32>
    %68 = arith.addf %53, %54 : vector<16x128xf32>
    %cst_27 = arith.constant 8.99999984E-4 : f32
    %69 = vector.broadcast %cst_27 : f32 to vector<16x128xf32>
    %70 = arith.addf %68, %69 : vector<16x128xf32>
    %71 = arith.mulf %67, %70 : vector<16x128xf32>
    %72 = arith.divf %64, %71 : vector<16x128xf32>
    %cst_28 = arith.constant 0.000000e+00 : f32
    %73 = vector.broadcast %cst_28 : f32 to vector<16x128xf32>
    %74 = arith.select %12, %72, %73 : vector<16x128xi1>, vector<16x128xf32>
    %75 = vector.shape_cast %74 : vector<16x128xf32> to vector<1x16x128xf32>
    %cst_29 = arith.constant dense<0.000000e+00> : vector<1xf32>
    %76 = vector.multi_reduction <add>, %75, %cst_29 [1, 2] : vector<1x16x128xf32> to vector<1xf32>
    %77 = vector.shape_cast %76 : vector<1xf32> to vector<1x1x1xf32>
    %78 = vector.extract %77[0, 0, 0] : f32 from vector<1x1x1xf32>
    %79 = vector.broadcast %78 : f32 to vector<1x8x128xf32>
    %c0_30 = arith.constant 0 : index
    %c0_31 = arith.constant 0 : index
    %c0_32 = arith.constant 0 : index
    %80 = vector.load %arg6[%c0_30, %c0_31, %c0_32] : memref<1x8x128xf32, #tpu.memory_space<vmem>>, vector<1x8x128xf32>
    tpu.vector_store %arg6[%c0_30, %c0_31, %c0_32], %79 {strides = array<i32>} : memref<1x8x128xf32, #tpu.memory_space<vmem>>, vector<1x8x128xf32>,
    return
  }
  func.func @transform_0(%arg0: i32) -> i32 {
    %c0_i32 = arith.constant 0 : i32
    %c0_i32_0 = arith.constant 0 : i32
    return %c0_i32 : i32
  }
  func.func @transform_1(%arg0: i32) -> (i32, i32, i32) {
    %c0_i32 = arith.constant 0 : i32
    %c0_i32_0 = arith.constant 0 : i32
    %c0_i32_1 = arith.constant 0 : i32
    return %arg0, %c0_i32, %c0_i32_0 : i32, i32, i32
  }
  func.func @transform_2(%arg0: i32) -> (i32, i32, i32) {
    %c0_i32 = arith.constant 0 : i32
    %c0_i32_0 = arith.constant 0 : i32
    %c0_i32_1 = arith.constant 0 : i32
    return %arg0, %c0_i32, %c0_i32_0 : i32, i32, i32
  }
  func.func @transform_3(%arg0: i32) -> (i32, i32) {
    %c0_i32 = arith.constant 0 : i32
    %c0_i32_0 = arith.constant 0 : i32
    %c0_i32_1 = arith.constant 0 : i32
    return %c0_i32, %c0_i32_0 : i32, i32
  }
  func.func @transform_4(%arg0: i32) -> (i32, i32) {
    %c0_i32 = arith.constant 0 : i32
    %c0_i32_0 = arith.constant 0 : i32
    %c0_i32_1 = arith.constant 0 : i32
    return %c0_i32, %c0_i32_0 : i32, i32
  }
  func.func @transform_5(%arg0: i32) -> (i32, i32, i32) {
    %c0_i32 = arith.constant 0 : i32
    %c0_i32_0 = arith.constant 0 : i32
    %c0_i32_1 = arith.constant 0 : i32
    return %arg0, %c0_i32, %c0_i32_0 : i32, i32, i32
  }
}

</mosaic_0001>

<llo_original>
// kernel: ssim_loss.1
$region0: #{ssim_loss.1}
  #allocation0 [shape = 'u32[]', space=smem, size = 0x4, offset = 0x4, fixed_abs, tag = 'smem constant byte address 0x4 - core index']
  #allocation1 [shape = 'u32[144,128]{1,0:T(1,128)}', space=vmem, size = 0x12000, scoped, tag = 'internal scratch']
  %s0 = inlined_call_operand.vmem [shape: f32[2], index: 0, kind: input, shape index: {}]
  %s1 = inlined_call_operand.vmem [shape: f32[2,16,128], index: 1, kind: input, shape index: {}]
  %s2 = inlined_call_operand.vmem [shape: f32[2,16,128], index: 2, kind: input, shape index: {}]
  %s3 = inlined_call_operand.vmem [shape: f32[16,16], index: 3, kind: input, shape index: {}]
  %s4 = inlined_call_operand.vmem [shape: f32[128,128], index: 4, kind: input, shape index: {}]
  %s5 = inlined_call_operand.vmem [shape: f32[2,8,128], index: 5, kind: output, shape index: {}]
  %s6 = sld [smem:[#allocation0]]
  $region57: #{ssim_loss.1} parent=0
    _
  %s8 = ssub.s32 1, %s6
  %s9 = scalar_select 0, %s8, %s6
  $region1: #{ssim_loss.1} parent=0
    #allocation2 [shape = 'u8[512]{0}', space=smem, size = 0x200, scoped, tag = 'input window, operand 0, single buffered']
    #allocation3 [shape = 's32[2]{0}', space=sflag, size = 0x8, scoped, tag = 'scoped memory for ssim_loss.1']
    %10 = vsyncpa [#allocation3], 0
    loop: start=0, step=1, limit=4
    $region2: #{ssim_loss.1} parent=1 // loop_pre_header
      _
    $region3: #{ssim_loss.1} parent=1 // loop_header
      %s12 = sphi 0, %s16
      %p13 = scmp.ge.s32.totalorder %s12, 4
      %s20 = sphi 0, %s20
      %s22 = sphi 0, %s20
      %s23 = sphi 0, %s22
      %s37 = sphi 0, %s23
      %s43 = sphi 0, %s45
      %s46 = sphi 0, %s43
      %s47 = sphi 0, %s46
      %s63 = sphi 0, %s47
      %s69 = sphi 0, %s71
      %s72 = sphi 0, %s69
      %s73 = sphi 0, %s72
      %s89 = sphi 0, %s73
      %s93 = sphi 0, %s93
      %s95 = sphi 0, %s93
      %s96 = sphi 0, %s95
      %s110 = sphi 0, %s96
      %s114 = sphi 0, %s114
      %s116 = sphi 0, %s114
      %s117 = sphi 0, %s116
      %s131 = sphi 0, %s117
      %s137 = sphi 0, %s139
      %s140 = sphi 0, %s137
      %s141 = sphi 0, %s140
      %s157 = sphi 0, %s141
    $region4: #{ssim_loss.1} parent=1 // loop_header_branch
      %15 = sbr.rel (%p13) target = $region8
    $region5: #{ssim_loss.1} parent=1 // loop_body
      %s17 = ssub.s32 %s12, 1
      %s18 = ssub.s32 %s12, 2
      %s19 = sadd.s32 %s12, 1
      %s21 = sadd.s32 %s20, 1
      %p24 = scmp.eq.s32.totalorder %s12, 1
      %p25 = scmp.ne.s32.totalorder %s20, %s22
      %p26 = scmp.eq.s32.totalorder %s12, 0
      %p27 = por %p25, %p26
      %p28 = scmp.ne.s32.totalorder %s20, %s22
      %p29 = scmp.eq.s32.totalorder %s17, 1
      %p30 = por %p28, %p29
      %p31 = scmp.ne.s32.totalorder %s22, %s23
      %p32 = scmp.eq.s32.totalorder %s17, 0
      %p33 = por %p31, %p32
      %p34 = scmp.ne.s32.totalorder %s22, %s23
      %p35 = scmp.eq.s32.totalorder %s18, 1
      %p36 = por %p34, %p35
      %p38 = scmp.ne.s32.totalorder %s23, %s37
      %p39 = scmp.eq.s32.totalorder %s18, 0
      %p40 = por %p38, %p39
      %s41 = ssub.s32 %s12, %s19
      %p42 = scmp.eq.s32.totalorder %s41, 0
      %s44 = sadd.s32 %s43, 1
      %s45 = scalar_select %p42, %s43, %s44
      %p48 = pneg %p42
      %p49 = scmp.eq.s32.totalorder %s12, 1
      %p50 = por %p48, %p49
      %p51 = scmp.ne.s32.totalorder %s43, %s46
      %p52 = scmp.eq.s32.totalorder %s12, 0
      %p53 = por %p51, %p52
      %p54 = scmp.ne.s32.totalorder %s43, %s46
      %p55 = scmp.eq.s32.totalorder %s17, 1
      %p56 = por %p54, %p55
      %p57 = scmp.ne.s32.totalorder %s46, %s47
      %p58 = scmp.eq.s32.totalorder %s17, 0
      %p59 = por %p57, %p58
      %p60 = scmp.ne.s32.totalorder %s46, %s47
      %p61 = scmp.eq.s32.totalorder %s18, 1
      %p62 = por %p60, %p61
      %p64 = scmp.ne.s32.totalorder %s47, %s63
      %p65 = scmp.eq.s32.totalorder %s18, 0
      %p66 = por %p64, %p65
      %s67 = ssub.s32 %s12, %s19
      %p68 = scmp.eq.s32.totalorder %s67, 0
      %s70 = sadd.s32 %s69, 1
      %s71 = scalar_select %p68, %s69, %s70
      %p74 = pneg %p68
      %p75 = scmp.eq.s32.totalorder %s12, 1
      %p76 = por %p74, %p75
      %p77 = scmp.ne.s32.totalorder %s69, %s72
      %p78 = scmp.eq.s32.totalorder %s12, 0
      %p79 = por %p77, %p78
      %p80 = scmp.ne.s32.totalorder %s69, %s72
      %p81 = scmp.eq.s32.totalorder %s17, 1
      %p82 = por %p80, %p81
      %p83 = scmp.ne.s32.totalorder %s72, %s73
      %p84 = scmp.eq.s32.totalorder %s17, 0
      %p85 = por %p83, %p84
      %p86 = scmp.ne.s32.totalorder %s72, %s73
      %p87 = scmp.eq.s32.totalorder %s18, 1
      %p88 = por %p86, %p87
      %p90 = scmp.ne.s32.totalorder %s73, %s89
      %p91 = scmp.eq.s32.totalorder %s18, 0
      %p92 = por %p90, %p91
      %s94 = sadd.s32 %s93, 1
      %p97 = scmp.eq.s32.totalorder %s12, 1
      %p98 = scmp.ne.s32.totalorder %s93, %s95
      %p99 = scmp.eq.s32.totalorder %s12, 0
      %p100 = por %p98, %p99
      %p101 = scmp.ne.s32.totalorder %s93, %s95
      %p102 = scmp.eq.s32.totalorder %s17, 1
      %p103 = por %p101, %p102
      %p104 = scmp.ne.s32.totalorder %s95, %s96
      %p105 = scmp.eq.s32.totalorder %s17, 0
      %p106 = por %p104, %p105
      %p107 = scmp.ne.s32.totalorder %s95, %s96
      %p108 = scmp.eq.s32.totalorder %s18, 1
      %p109 = por %p107, %p108
      %p111 = scmp.ne.s32.totalorder %s96, %s110
      %p112 = scmp.eq.s32.totalorder %s18, 0
      %p113 = por %p111, %p112
      %s115 = sadd.s32 %s114, 1
      %p118 = scmp.eq.s32.totalorder %s12, 1
      %p119 = scmp.ne.s32.totalorder %s114, %s116
      %p120 = scmp.eq.s32.totalorder %s12, 0
      %p121 = por %p119, %p120
      %p122 = scmp.ne.s32.totalorder %s114, %s116
      %p123 = scmp.eq.s32.totalorder %s17, 1
      %p124 = por %p122, %p123
      %p125 = scmp.ne.s32.totalorder %s116, %s117
      %p126 = scmp.eq.s32.totalorder %s17, 0
      %p127 = por %p125, %p126
      %p128 = scmp.ne.s32.totalorder %s116, %s117
      %p129 = scmp.eq.s32.totalorder %s18, 1
      %p130 = por %p128, %p129
      %p132 = scmp.ne.s32.totalorder %s117, %s131
      %p133 = scmp.eq.s32.totalorder %s18, 0
      %p134 = por %p132, %p133
      %s135 = ssub.s32 %s12, %s19
      %p136 = scmp.eq.s32.totalorder %s135, 0
      %s138 = sadd.s32 %s137, 1
      %s139 = scalar_select %p136, %s137, %s138
      %p142 = pneg %p136
      %p143 = scmp.eq.s32.totalorder %s12, 1
      %p144 = por %p142, %p143
      %p145 = scmp.ne.s32.totalorder %s137, %s140
      %p146 = scmp.eq.s32.totalorder %s12, 0
      %p147 = por %p145, %p146
      %p148 = scmp.ne.s32.totalorder %s137, %s140
      %p149 = scmp.eq.s32.totalorder %s17, 1
      %p150 = por %p148, %p149
      %p151 = scmp.ne.s32.totalorder %s140, %s141
      %p152 = scmp.eq.s32.totalorder %s17, 0
      %p153 = por %p151, %p152
      %p154 = scmp.ne.s32.totalorder %s140, %s141
      %p155 = scmp.eq.s32.totalorder %s18, 1
      %p156 = por %p154, %p155
      %p158 = scmp.ne.s32.totalorder %s141, %s157
      %p159 = scmp.eq.s32.totalorder %s18, 0
      %p160 = por %p158, %p159
      %p161 = scmp.le.s32.totalorder 1, %s12
      %p162 = scmp.lt.s32.totalorder %s12, 3
      %p163 = pnand %p161, %p162
      %p164 = pneg %p163
      // Predicated region
      $region9: #{ssim_loss.1} parent=5 // pred_check
        _
      $region10: #{ssim_loss.1} parent=5 // pred_check_branch
        %166 = sbr.rel (%p163) target = $region12
      $region11: #{ssim_loss.1} parent=5 // pred_region
        %s167 = ssub.s32 %s12, 1
        // Predicated region
        $region13: #{ssim_loss.1} parent=11 // pred_check
          %p168 = pneg %p33
        $region14: #{ssim_loss.1} parent=11 // pred_check_branch
          %170 = sbr.rel (%p168) target = $region16
        $region15: #{ssim_loss.1} parent=11 // pred_region
          %s172 = ssub.s32 16, 16
          %173 = vsyncadd [#allocation3], %s172
          %s175 = sshll.u32 %s0, 4
          %s176 = int_to_ptr.vmem [resolvable:$true] %s175
          %178 = dma.vmem_to_smem %s176, 16, [#allocation2], [#allocation3]
        $region16: #{ssim_loss.1} parent=11 // pred_fallthru
          _
        // Predicated region
        $region17: #{ssim_loss.1} parent=11 // pred_check
          %p179 = pneg %p106
        $region18: #{ssim_loss.1} parent=11 // pred_check_branch
          %181 = sbr.rel (%p179) target = $region20
        $region19: #{ssim_loss.1} parent=11 // pred_region
          _
        $region20: #{ssim_loss.1} parent=11 // pred_fallthru
          _
        // Predicated region
        $region21: #{ssim_loss.1} parent=11 // pred_check
          %p182 = pneg %p127
        $region22: #{ssim_loss.1} parent=11 // pred_check_branch
          %184 = sbr.rel (%p182) target = $region24
        $region23: #{ssim_loss.1} parent=11 // pred_region
          _
        $region24: #{ssim_loss.1} parent=11 // pred_fallthru
          _
      $region12: #{ssim_loss.1} parent=5 // pred_fallthru
        _
      %p185 = scmp.lt.s32.totalorder %s12, 2
      // Predicated region
      $region25: #{ssim_loss.1} parent=5 // pred_check
        %p186 = pneg %p185
      $region26: #{ssim_loss.1} parent=5 // pred_check_branch
        %188 = sbr.rel (%p186) target = $region28
      $region27: #{ssim_loss.1} parent=5 // pred_region
        // Predicated region
        $region29: #{ssim_loss.1} parent=27 // pred_check
          %p189 = pneg %p53
        $region30: #{ssim_loss.1} parent=27 // pred_check_branch
          %191 = sbr.rel (%p189) target = $region32
        $region31: #{ssim_loss.1} parent=27 // pred_region
          %p192 = scmp.lt.s32.totalorder %s12, 1
          %s193 = scalar_select %p192, %s12, 1
          %s194 = smul.addr %s193, 2
          %s195 = smul.addr %s194, 8
          %s196 = scalar_lea.vmem %s1, %s195
        $region32: #{ssim_loss.1} parent=27 // pred_fallthru
          _
        // Predicated region
        $region33: #{ssim_loss.1} parent=27 // pred_check
          %p197 = pneg %p79
        $region34: #{ssim_loss.1} parent=27 // pred_check_branch
          %199 = sbr.rel (%p197) target = $region36
        $region35: #{ssim_loss.1} parent=27 // pred_region
          %p200 = scmp.lt.s32.totalorder %s12, 1
          %s201 = scalar_select %p200, %s12, 1
          %s202 = smul.addr %s201, 2
          %s203 = smul.addr %s202, 8
          %s204 = scalar_lea.vmem %s2, %s203
        $region36: #{ssim_loss.1} parent=27 // pred_fallthru
          _
      $region28: #{ssim_loss.1} parent=5 // pred_fallthru
        _
      %p205 = scmp.le.s32.totalorder 1, %s12
      %p206 = scmp.lt.s32.totalorder %s12, 3
      %p207 = pnand %p205, %p206
      %p208 = pneg %p207
      // Predicated region
      $region37: #{ssim_loss.1} parent=5 // pred_check
        _
      $region38: #{ssim_loss.1} parent=5 // pred_check_branch
        %210 = sbr.rel (%p207) target = $region40
      $region39: #{ssim_loss.1} parent=5 // pred_region
        %s211 = ssub.s32 %s12, 1
        // Predicated region
        $region41: #{ssim_loss.1} parent=39 // pred_check
          %p212 = pneg %p33
        $region42: #{ssim_loss.1} parent=39 // pred_check_branch
          %214 = sbr.rel (%p212) target = $region44
        $region43: #{ssim_loss.1} parent=39 // pred_region
          %215 = dma.done [#allocation3], 16
        $region44: #{ssim_loss.1} parent=39 // pred_fallthru
          _
        %216 = sfence
        %p217 = pneg %p33
        %p218 = pneg %p30
        %p219 = scmp.lt.s32.totalorder %s17, 1
        %s220 = scalar_select %p219, %s17, 1
        %s221 = smul.addr %s220, 2
        %s222 = smul.addr %s221, 8
        %s223 = scalar_lea.vmem %s1, %s222
        %p224 = pneg %p59
        %p225 = pneg %p56
        %p226 = scmp.lt.s32.totalorder %s17, 1
        %s227 = scalar_select %p226, %s17, 1
        %s228 = smul.addr %s227, 2
        %s229 = smul.addr %s228, 8
        %s230 = scalar_lea.vmem %s2, %s229
        %p231 = pneg %p85
        %p232 = pneg %p82
        %p233 = pneg %p106
        %p234 = pneg %p103
        %p235 = pneg %p127
        %p236 = pneg %p124
        %p237 = pneg %p153
        %p238 = pneg %p150
        %p239 = scmp.lt.s32.totalorder %s17, 1
        %s240 = scalar_select %p239, %s17, 1
        %s241 = smul.addr %s240, 8
        %s242 = scalar_lea.vmem %s5, %s241
        %p243 = scmp.lt.s32.totalorder %s17, 1
        %s244 = scalar_select %p243, %s17, 1
        %s245 = smul.addr %s244, 2
        %s246 = smul.addr %s245, 8
        %s247 = scalar_lea.vmem %s1, %s246
        %p248 = scmp.lt.s32.totalorder %s17, 1
        %s249 = scalar_select %p248, %s17, 1
        %s250 = smul.addr %s249, 2
        %s251 = smul.addr %s250, 8
        %s252 = scalar_lea.vmem %s2, %s251
        %p253 = scmp.lt.s32.totalorder %s17, 1
        %s254 = scalar_select %p253, %s17, 1
        %s255 = smul.addr %s254, 8
        %s256 = scalar_lea.vmem %s5, %s255
        %s257 = sld [smem:[#allocation2]]
        %s258 = sld [smem:[#allocation2 + $0x1]]
        %v259 = vld [vmem:[%s247] sm:$0xff]
        %v260 = vld [vmem:[%s247 + $0x8] sm:$0xff]
        %v261 = vld [vmem:[%s252] sm:$0xff]
        %v262 = vld [vmem:[%s252 + $0x8] sm:$0xff]
        %v263 = vlaneseq
        %v264 = vshrl.u32 %v263, 7
        %v265 = vadd.s32 %v264, 8
        %v266 = vlaneseq
        %v267 = vand.u32 %v266, 127
        %vm268 = vcmp.lt.s32.totalorder %v264, 16
        %vm269 = vcmp.lt.s32.totalorder %v265, 16
        %vm270 = vcmp.lt.s32.totalorder %v267, 16
        %vm271 = vmand %vm268, %vm270
        %vm272 = vmand %vm269, %vm270
        %v273 = vstv %s257
        %v274 = vsub.f32 %v259, %v273
        %v275 = vsub.f32 %v260, %v273
        %v276 = vstv %s258
        %v277 = vmul.f32 %v274, %v276
        %v278 = vmul.f32 %v275, %v276
        %v279 = vmax.f32 %v277, 0.0
        %v280 = vmax.f32 %v278, 0.0
        %v281 = vmin.f32 %v279, 1.0
        %v282 = vmin.f32 %v280, 1.0
        %v283 = vsub.f32 %v261, %v273
        %v284 = vsub.f32 %v262, %v273
        %v285 = vmul.f32 %v283, %v276
        %v286 = vmul.f32 %v284, %v276
        %v287 = vmax.f32 %v285, 0.0
        %v288 = vmax.f32 %v286, 0.0
        %v289 = vmin.f32 %v287, 1.0
        %v290 = vmin.f32 %v288, 1.0
        %v291 = vsel %vm271, %v281, 0.0
        %v292 = vsel %vm272, %v282, 0.0
        %v293 = vsel %vm271, %v289, 0.0
        %v294 = vsel %vm272, %v290, 0.0
        %v295 = vmul.f32 %v291, %v291
        %v296 = vmul.f32 %v292, %v292
        %v297 = vmul.f32 %v293, %v293
        %v298 = vmul.f32 %v294, %v294
        %v299 = vmul.f32 %v291, %v293
        %v300 = vmul.f32 %v292, %v294
        %v301 = vld [vmem:[%s4] sm:$0xff]
        %v302 = vld [vmem:[%s4 + $0x8] sm:$0xff]
        %v303 = vld [vmem:[%s4 + $0x10] sm:$0xff]
        %v304 = vld [vmem:[%s4 + $0x18] sm:$0xff]
        %v305 = vld [vmem:[%s4 + $0x20] sm:$0xff]
        %v306 = vld [vmem:[%s4 + $0x28] sm:$0xff]
        %v307 = vld [vmem:[%s4 + $0x30] sm:$0xff]
        %v308 = vld [vmem:[%s4 + $0x38] sm:$0xff]
        %v309 = vld [vmem:[%s4 + $0x40] sm:$0xff]
        %v310 = vld [vmem:[%s4 + $0x48] sm:$0xff]
        %v311 = vld [vmem:[%s4 + $0x50] sm:$0xff]
        %v312 = vld [vmem:[%s4 + $0x58] sm:$0xff]
        %v313 = vld [vmem:[%s4 + $0x60] sm:$0xff]
        %v314 = vld [vmem:[%s4 + $0x68] sm:$0xff]
        %v315 = vld [vmem:[%s4 + $0x70] sm:$0xff]
        %v316 = vld [vmem:[%s4 + $0x78] sm:$0xff]
        %v317 = vld [vmem:[%s3] sm:$0xff]
        %v318 = vld [vmem:[%s3 + $0x8] sm:$0xff]
        %319 = vmatprep.subr.mxu0 0.0
        %320 = vmatpush1.msra.mxu0 %v316
        %321 = vmatprep.subr.mxu0 0.0
        %322 = vmatpush1.msra.mxu0 %v315
        %323 = vmatprep.subr.mxu0 0.0
        %324 = vmatpush1.msra.mxu0 %v314
        %325 = vmatprep.subr.mxu0 0.0
        %326 = vmatpush1.msra.mxu0 %v313
        %327 = vmatprep.subr.mxu0 0.0
        %328 = vmatpush1.msra.mxu0 %v312
        %329 = vmatprep.subr.mxu0 0.0
        %330 = vmatpush1.msra.mxu0 %v311
        %331 = vmatprep.subr.mxu0 0.0
        %332 = vmatpush1.msra.mxu0 %v310
        %333 = vmatprep.subr.mxu0 0.0
        %334 = vmatpush1.msra.mxu0 %v309
        %335 = vmatprep.subr.mxu0 0.0
        %336 = vmatpush1.msra.mxu0 %v308
        %337 = vmatprep.subr.mxu0 0.0
        %338 = vmatpush1.msra.mxu0 %v307
        %339 = vmatprep.subr.mxu0 0.0
        %340 = vmatpush1.msra.mxu0 %v306
        %341 = vmatprep.subr.mxu0 0.0
        %342 = vmatpush1.msra.mxu0 %v305
        %343 = vmatprep.subr.mxu0 0.0
        %344 = vmatpush1.msra.mxu0 %v304
        %345 = vmatprep.subr.mxu0 0.0
        %346 = vmatpush1.msra.mxu0 %v303
        %347 = vmatprep.subr.mxu0 0.0
        %348 = vmatpush1.msra.mxu0 %v302
        %349 = vmatprep.subr.mxu0 0.0
        %350 = vmatpush1.msra.mxu0 %v301
        %351 = vmatprep.subr.mxu0 0.0
        %352 = vmatpush2.msra.mxu0 0.0
        %353 = vmatprep.subr.mxu0 0.0
        %354 = vmatpush2.msra.mxu0 0.0
        %355 = vmatprep.subr.mxu0 0.0
        %356 = vmatpush2.msra.mxu0 0.0
        %357 = vmatprep.subr.mxu0 0.0
        %358 = vmatpush2.msra.mxu0 0.0
        %359 = vmatprep.subr.mxu0 0.0
        %360 = vmatpush2.msra.mxu0 0.0
        %361 = vmatprep.subr.mxu0 0.0
        %362 = vmatpush2.msra.mxu0 0.0
        %363 = vmatprep.subr.mxu0 0.0
        %364 = vmatpush2.msra.mxu0 0.0
        %365 = vmatprep.subr.mxu0 0.0
        %366 = vmatpush2.msra.mxu0 0.0
        %367 = vmatprep.subr.mxu0 0.0
        %368 = vmatpush2.msra.mxu0 0.0
        %369 = vmatprep.subr.mxu0 0.0
        %370 = vmatpush2.msra.mxu0 0.0
        %371 = vmatprep.subr.mxu0 0.0
        %372 = vmatpush2.msra.mxu0 0.0
        %373 = vmatprep.subr.mxu0 0.0
        %374 = vmatpush2.msra.mxu0 0.0
        %375 = vmatprep.subr.mxu0 0.0
        %376 = vmatpush2.msra.mxu0 0.0
        %377 = vmatprep.subr.mxu0 0.0
        %378 = vmatpush2.msra.mxu0 0.0
        %379 = vmatprep.subr.mxu0 0.0
        %380 = vmatpush2.msra.mxu0 0.0
        %381 = vmatprep.subr.mxu0 0.0
        %382 = vmatpush2.msra.mxu0 0.0
        %383 = vmatprep.mubr.f32.mxu0 0.0
        %384 = vmatmul.mubr.f32.gmra.mxu0 %v291
        %v385 = vpop.f32.mrf.mxu0
        %v386 = vadd.f32 0.0, %v385
        %v387 = vpop.f32.mrf.mxu0
        %388 = vmatprep.mubr.f32.mxu0 0.0
        %389 = vmatmul.mubr.f32.gmra.mxu0 %v292
        %v390 = vpop.f32.mrf.mxu0
        %v391 = vadd.f32 0.0, %v390
        %v392 = vpop.f32.mrf.mxu0
        %393 = vmatprep.mubr.f32.mxu0 0.0
        %394 = vmatmul.mubr.f32.gmra.mxu0 %v293
        %v395 = vpop.f32.mrf.mxu0
        %v396 = vadd.f32 0.0, %v395
        %v397 = vpop.f32.mrf.mxu0
        %398 = vmatprep.mubr.f32.mxu0 0.0
        %399 = vmatmul.mubr.f32.gmra.mxu0 %v294
        %v400 = vpop.f32.mrf.mxu0
        %v401 = vadd.f32 0.0, %v400
        %v402 = vpop.f32.mrf.mxu0
        %403 = vmatprep.mubr.f32.mxu0 0.0
        %404 = vmatmul.mubr.f32.gmra.mxu0 %v295
        %v405 = vpop.f32.mrf.mxu0
        %v406 = vadd.f32 0.0, %v405
        %v407 = vpop.f32.mrf.mxu0
        %408 = vmatprep.mubr.f32.mxu0 0.0
        %409 = vmatmul.mubr.f32.gmra.mxu0 %v296
        %v410 = vpop.f32.mrf.mxu0
        %v411 = vadd.f32 0.0, %v410
        %v412 = vpop.f32.mrf.mxu0
        %413 = vmatprep.mubr.f32.mxu0 0.0
        %414 = vmatmul.mubr.f32.gmra.mxu0 %v297
        %v415 = vpop.f32.mrf.mxu0
        %v416 = vadd.f32 0.0, %v415
        %v417 = vpop.f32.mrf.mxu0
        %418 = vmatprep.mubr.f32.mxu0 0.0
        %419 = vmatmul.mubr.f32.gmra.mxu0 %v298
        %v420 = vpop.f32.mrf.mxu0
        %v421 = vadd.f32 0.0, %v420
        %v422 = vpop.f32.mrf.mxu0
        %423 = vmatprep.mubr.f32.mxu0 0.0
        %424 = vmatmul.mubr.f32.gmra.mxu0 %v299
        %v425 = vpop.f32.mrf.mxu0
        %v426 = vadd.f32 0.0, %v425
        %v427 = vpop.f32.mrf.mxu0
        %428 = vmatprep.mubr.f32.mxu0 0.0
        %429 = vmatmul.mubr.f32.gmra.mxu0 %v300
        %v430 = vpop.f32.mrf.mxu0
        %v431 = vadd.f32 0.0, %v430
        %v432 = vpop.f32.mrf.mxu0
        %433 = vdwg.mxu0
        %vm434 = vcmask 130048
        %v436 = vsel %vm434, %v317, 0
        %v439 = vsel %vm434, %v318, 0
        %441 = vmatprep.subr.mxu0 0.0
        %442 = vmatpush1.msra.mxu0 0.0
        %443 = vmatprep.subr.mxu0 0.0
        %444 = vmatpush1.msra.mxu0 0.0
        %445 = vmatprep.subr.mxu0 0.0
        %446 = vmatpush1.msra.mxu0 0.0
        %447 = vmatprep.subr.mxu0 0.0
        %448 = vmatpush1.msra.mxu0 0.0
        %449 = vmatprep.subr.mxu0 0.0
        %450 = vmatpush1.msra.mxu0 0.0
        %451 = vmatprep.subr.mxu0 0.0
        %452 = vmatpush1.msra.mxu0 0.0
        %453 = vmatprep.subr.mxu0 0.0
        %454 = vmatpush1.msra.mxu0 0.0
        %455 = vmatprep.subr.mxu0 0.0
        %456 = vmatpush1.msra.mxu0 0.0
        %457 = vmatprep.subr.mxu0 0.0
        %458 = vmatpush1.msra.mxu0 0.0
        %459 = vmatprep.subr.mxu0 0.0
        %460 = vmatpush1.msra.mxu0 0.0
        %461 = vmatprep.subr.mxu0 0.0
        %462 = vmatpush1.msra.mxu0 0.0
        %463 = vmatprep.subr.mxu0 0.0
        %464 = vmatpush1.msra.mxu0 0.0
        %465 = vmatprep.subr.mxu0 0.0
        %466 = vmatpush1.msra.mxu0 0.0
        %467 = vmatprep.subr.mxu0 0.0
        %468 = vmatpush1.msra.mxu0 0.0
        %469 = vmatprep.subr.mxu0 0.0
        %470 = vmatpush1.msra.mxu0 %v391
        %471 = vmatprep.subr.mxu0 0.0
        %472 = vmatpush1.msra.mxu0 %v386
        %473 = vmatprep.subr.mxu0 0.0
        %474 = vmatpush2.msra.mxu0 0.0
        %475 = vmatprep.subr.mxu0 0.0
        %476 = vmatpush2.msra.mxu0 0.0
        %477 = vmatprep.subr.mxu0 0.0
        %478 = vmatpush2.msra.mxu0 0.0
        %479 = vmatprep.subr.mxu0 0.0
        %480 = vmatpush2.msra.mxu0 0.0
        %481 = vmatprep.subr.mxu0 0.0
        %482 = vmatpush2.msra.mxu0 0.0
        %483 = vmatprep.subr.mxu0 0.0
        %484 = vmatpush2.msra.mxu0 0.0
        %485 = vmatprep.subr.mxu0 0.0
        %486 = vmatpush2.msra.mxu0 0.0
        %487 = vmatprep.subr.mxu0 0.0
        %488 = vmatpush2.msra.mxu0 0.0
        %489 = vmatprep.subr.mxu0 0.0
        %490 = vmatpush2.msra.mxu0 0.0
        %491 = vmatprep.subr.mxu0 0.0
        %492 = vmatpush2.msra.mxu0 0.0
        %493 = vmatprep.subr.mxu0 0.0
        %494 = vmatpush2.msra.mxu0 0.0
        %495 = vmatprep.subr.mxu0 0.0
        %496 = vmatpush2.msra.mxu0 0.0
        %497 = vmatprep.subr.mxu0 0.0
        %498 = vmatpush2.msra.mxu0 0.0
        %499 = vmatprep.subr.mxu0 0.0
        %500 = vmatpush2.msra.mxu0 0.0
        %501 = vmatprep.subr.mxu0 0.0
        %502 = vmatpush2.msra.mxu0 0.0
        %503 = vmatprep.subr.mxu0 0.0
        %504 = vmatpush2.msra.mxu0 0.0
        %505 = vmatprep.mubr.f32.mxu0 0.0
        %506 = vmatmul.mubr.f32.gmra.mxu0 %v436
        %v507 = vpop.f32.mrf.mxu0
        %v508 = vadd.f32 0.0, %v507
        %v509 = vpop.f32.mrf.mxu0
        %510 = vmatprep.mubr.f32.mxu0 0.0
        %511 = vmatmul.mubr.f32.gmra.mxu0 %v439
        %v512 = vpop.f32.mrf.mxu0
        %v513 = vadd.f32 0.0, %v512
        %v514 = vpop.f32.mrf.mxu0
        %515 = vdwg.mxu0
        %516 = vmatprep.subr.mxu0 0.0
        %517 = vmatpush1.msra.mxu0 0.0
        %518 = vmatprep.subr.mxu0 0.0
        %519 = vmatpush1.msra.mxu0 0.0
        %520 = vmatprep.subr.mxu0 0.0
        %521 = vmatpush1.msra.mxu0 0.0
        %522 = vmatprep.subr.mxu0 0.0
        %523 = vmatpush1.msra.mxu0 0.0
        %524 = vmatprep.subr.mxu0 0.0
        %525 = vmatpush1.msra.mxu0 0.0
        %526 = vmatprep.subr.mxu0 0.0
        %527 = vmatpush1.msra.mxu0 0.0
        %528 = vmatprep.subr.mxu0 0.0
        %529 = vmatpush1.msra.mxu0 0.0
        %530 = vmatprep.subr.mxu0 0.0
        %531 = vmatpush1.msra.mxu0 0.0
        %532 = vmatprep.subr.mxu0 0.0
        %533 = vmatpush1.msra.mxu0 0.0
        %534 = vmatprep.subr.mxu0 0.0
        %535 = vmatpush1.msra.mxu0 0.0
        %536 = vmatprep.subr.mxu0 0.0
        %537 = vmatpush1.msra.mxu0 0.0
        %538 = vmatprep.subr.mxu0 0.0
        %539 = vmatpush1.msra.mxu0 0.0
        %540 = vmatprep.subr.mxu0 0.0
        %541 = vmatpush1.msra.mxu0 0.0
        %542 = vmatprep.subr.mxu0 0.0
        %543 = vmatpush1.msra.mxu0 0.0
        %544 = vmatprep.subr.mxu0 0.0
        %545 = vmatpush1.msra.mxu0 %v401
        %546 = vmatprep.subr.mxu0 0.0
        %547 = vmatpush1.msra.mxu0 %v396
        %548 = vmatprep.subr.mxu0 0.0
        %549 = vmatpush2.msra.mxu0 0.0
        %550 = vmatprep.subr.mxu0 0.0
        %551 = vmatpush2.msra.mxu0 0.0
        %552 = vmatprep.subr.mxu0 0.0
        %553 = vmatpush2.msra.mxu0 0.0
        %554 = vmatprep.subr.mxu0 0.0
        %555 = vmatpush2.msra.mxu0 0.0
        %556 = vmatprep.subr.mxu0 0.0
        %557 = vmatpush2.msra.mxu0 0.0
        %558 = vmatprep.subr.mxu0 0.0
        %559 = vmatpush2.msra.mxu0 0.0
        %560 = vmatprep.subr.mxu0 0.0
        %561 = vmatpush2.msra.mxu0 0.0
        %562 = vmatprep.subr.mxu0 0.0
        %563 = vmatpush2.msra.mxu0 0.0
        %564 = vmatprep.subr.mxu0 0.0
        %565 = vmatpush2.msra.mxu0 0.0
        %566 = vmatprep.subr.mxu0 0.0
        %567 = vmatpush2.msra.mxu0 0.0
        %568 = vmatprep.subr.mxu0 0.0
        %569 = vmatpush2.msra.mxu0 0.0
        %570 = vmatprep.subr.mxu0 0.0
        %571 = vmatpush2.msra.mxu0 0.0
        %572 = vmatprep.subr.mxu0 0.0
        %573 = vmatpush2.msra.mxu0 0.0
        %574 = vmatprep.subr.mxu0 0.0
        %575 = vmatpush2.msra.mxu0 0.0
        %576 = vmatprep.subr.mxu0 0.0
        %577 = vmatpush2.msra.mxu0 0.0
        %578 = vmatprep.subr.mxu0 0.0
        %579 = vmatpush2.msra.mxu0 0.0
        %580 = vmatprep.mubr.f32.mxu0 0.0
        %581 = vmatmul.mubr.f32.gmra.mxu0 %v436
        %v582 = vpop.f32.mrf.mxu0
        %v583 = vadd.f32 0.0, %v582
        %v584 = vpop.f32.mrf.mxu0
        %585 = vmatprep.mubr.f32.mxu0 0.0
        %586 = vmatmul.mubr.f32.gmra.mxu0 %v439
        %v587 = vpop.f32.mrf.mxu0
        %v588 = vadd.f32 0.0, %v587
        %v589 = vpop.f32.mrf.mxu0
        %590 = vdwg.mxu0
        %591 = vmatprep.subr.mxu0 0.0
        %592 = vmatpush1.msra.mxu0 0.0
        %593 = vmatprep.subr.mxu0 0.0
        %594 = vmatpush1.msra.mxu0 0.0
        %595 = vmatprep.subr.mxu0 0.0
        %596 = vmatpush1.msra.mxu0 0.0
        %597 = vmatprep.subr.mxu0 0.0
        %598 = vmatpush1.msra.mxu0 0.0
        %599 = vmatprep.subr.mxu0 0.0
        %600 = vmatpush1.msra.mxu0 0.0
        %601 = vmatprep.subr.mxu0 0.0
        %602 = vmatpush1.msra.mxu0 0.0
        %603 = vmatprep.subr.mxu0 0.0
        %604 = vmatpush1.msra.mxu0 0.0
        %605 = vmatprep.subr.mxu0 0.0
        %606 = vmatpush1.msra.mxu0 0.0
        %607 = vmatprep.subr.mxu0 0.0
        %608 = vmatpush1.msra.mxu0 0.0
        %609 = vmatprep.subr.mxu0 0.0
        %610 = vmatpush1.msra.mxu0 0.0
        %611 = vmatprep.subr.mxu0 0.0
        %612 = vmatpush1.msra.mxu0 0.0
        %613 = vmatprep.subr.mxu0 0.0
        %614 = vmatpush1.msra.mxu0 0.0
        %615 = vmatprep.subr.mxu0 0.0
        %616 = vmatpush1.msra.mxu0 0.0
        %617 = vmatprep.subr.mxu0 0.0
        %618 = vmatpush1.msra.mxu0 0.0
        %619 = vmatprep.subr.mxu0 0.0
        %620 = vmatpush1.msra.mxu0 %v411
        %621 = vmatprep.subr.mxu0 0.0
        %622 = vmatpush1.msra.mxu0 %v406
        %623 = vmatprep.subr.mxu0 0.0
        %624 = vmatpush2.msra.mxu0 0.0
        %625 = vmatprep.subr.mxu0 0.0
        %626 = vmatpush2.msra.mxu0 0.0
        %627 = vmatprep.subr.mxu0 0.0
        %628 = vmatpush2.msra.mxu0 0.0
        %629 = vmatprep.subr.mxu0 0.0
        %630 = vmatpush2.msra.mxu0 0.0
        %631 = vmatprep.subr.mxu0 0.0
        %632 = vmatpush2.msra.mxu0 0.0
        %633 = vmatprep.subr.mxu0 0.0
        %634 = vmatpush2.msra.mxu0 0.0
        %635 = vmatprep.subr.mxu0 0.0
        %636 = vmatpush2.msra.mxu0 0.0
        %637 = vmatprep.subr.mxu0 0.0
        %638 = vmatpush2.msra.mxu0 0.0
        %639 = vmatprep.subr.mxu0 0.0
        %640 = vmatpush2.msra.mxu0 0.0
        %641 = vmatprep.subr.mxu0 0.0
        %642 = vmatpush2.msra.mxu0 0.0
        %643 = vmatprep.subr.mxu0 0.0
        %644 = vmatpush2.msra.mxu0 0.0
        %645 = vmatprep.subr.mxu0 0.0
        %646 = vmatpush2.msra.mxu0 0.0
        %647 = vmatprep.subr.mxu0 0.0
        %648 = vmatpush2.msra.mxu0 0.0
        %649 = vmatprep.subr.mxu0 0.0
        %650 = vmatpush2.msra.mxu0 0.0
        %651 = vmatprep.subr.mxu0 0.0
        %652 = vmatpush2.msra.mxu0 0.0
        %653 = vmatprep.subr.mxu0 0.0
        %654 = vmatpush2.msra.mxu0 0.0
        %655 = vmatprep.mubr.f32.mxu0 0.0
        %656 = vmatmul.mubr.f32.gmra.mxu0 %v436
        %v657 = vpop.f32.mrf.mxu0
        %v658 = vadd.f32 0.0, %v657
        %v659 = vpop.f32.mrf.mxu0
        %660 = vmatprep.mubr.f32.mxu0 0.0
        %661 = vmatmul.mubr.f32.gmra.mxu0 %v439
        %v662 = vpop.f32.mrf.mxu0
        %v663 = vadd.f32 0.0, %v662
        %v664 = vpop.f32.mrf.mxu0
        %665 = vdwg.mxu0
        %666 = vmatprep.subr.mxu0 0.0
        %667 = vmatpush1.msra.mxu0 0.0
        %668 = vmatprep.subr.mxu0 0.0
        %669 = vmatpush1.msra.mxu0 0.0
        %670 = vmatprep.subr.mxu0 0.0
        %671 = vmatpush1.msra.mxu0 0.0
        %672 = vmatprep.subr.mxu0 0.0
        %673 = vmatpush1.msra.mxu0 0.0
        %674 = vmatprep.subr.mxu0 0.0
        %675 = vmatpush1.msra.mxu0 0.0
        %676 = vmatprep.subr.mxu0 0.0
        %677 = vmatpush1.msra.mxu0 0.0
        %678 = vmatprep.subr.mxu0 0.0
        %679 = vmatpush1.msra.mxu0 0.0
        %680 = vmatprep.subr.mxu0 0.0
        %681 = vmatpush1.msra.mxu0 0.0
        %682 = vmatprep.subr.mxu0 0.0
        %683 = vmatpush1.msra.mxu0 0.0
        %684 = vmatprep.subr.mxu0 0.0
        %685 = vmatpush1.msra.mxu0 0.0
        %686 = vmatprep.subr.mxu0 0.0
        %687 = vmatpush1.msra.mxu0 0.0
        %688 = vmatprep.subr.mxu0 0.0
        %689 = vmatpush1.msra.mxu0 0.0
        %690 = vmatprep.subr.mxu0 0.0
        %691 = vmatpush1.msra.mxu0 0.0
        %692 = vmatprep.subr.mxu0 0.0
        %693 = vmatpush1.msra.mxu0 0.0
        %694 = vmatprep.subr.mxu0 0.0
        %695 = vmatpush1.msra.mxu0 %v421
        %696 = vmatprep.subr.mxu0 0.0
        %697 = vmatpush1.msra.mxu0 %v416
        %698 = vmatprep.subr.mxu0 0.0
        %699 = vmatpush2.msra.mxu0 0.0
        %700 = vmatprep.subr.mxu0 0.0
        %701 = vmatpush2.msra.mxu0 0.0
        %702 = vmatprep.subr.mxu0 0.0
        %703 = vmatpush2.msra.mxu0 0.0
        %704 = vmatprep.subr.mxu0 0.0
        %705 = vmatpush2.msra.mxu0 0.0
        %706 = vmatprep.subr.mxu0 0.0
        %707 = vmatpush2.msra.mxu0 0.0
        %708 = vmatprep.subr.mxu0 0.0
        %709 = vmatpush2.msra.mxu0 0.0
        %710 = vmatprep.subr.mxu0 0.0
        %711 = vmatpush2.msra.mxu0 0.0
        %712 = vmatprep.subr.mxu0 0.0
        %713 = vmatpush2.msra.mxu0 0.0
        %714 = vmatprep.subr.mxu0 0.0
        %715 = vmatpush2.msra.mxu0 0.0
        %716 = vmatprep.subr.mxu0 0.0
        %717 = vmatpush2.msra.mxu0 0.0
        %718 = vmatprep.subr.mxu0 0.0
        %719 = vmatpush2.msra.mxu0 0.0
        %720 = vmatprep.subr.mxu0 0.0
        %721 = vmatpush2.msra.mxu0 0.0
        %722 = vmatprep.subr.mxu0 0.0
        %723 = vmatpush2.msra.mxu0 0.0
        %724 = vmatprep.subr.mxu0 0.0
        %725 = vmatpush2.msra.mxu0 0.0
        %726 = vmatprep.subr.mxu0 0.0
        %727 = vmatpush2.msra.mxu0 0.0
        %728 = vmatprep.subr.mxu0 0.0
        %729 = vmatpush2.msra.mxu0 0.0
        %730 = vmatprep.mubr.f32.mxu0 0.0
        %731 = vmatmul.mubr.f32.gmra.mxu0 %v436
        %v732 = vpop.f32.mrf.mxu0
        %v733 = vadd.f32 0.0, %v732
        %v734 = vpop.f32.mrf.mxu0
        %735 = vmatprep.mubr.f32.mxu0 0.0
        %736 = vmatmul.mubr.f32.gmra.mxu0 %v439
        %v737 = vpop.f32.mrf.mxu0
        %v738 = vadd.f32 0.0, %v737
        %v739 = vpop.f32.mrf.mxu0
        %740 = vdwg.mxu0
        %741 = vmatprep.subr.mxu0 0.0
        %742 = vmatpush1.msra.mxu0 0.0
        %743 = vmatprep.subr.mxu0 0.0
        %744 = vmatpush1.msra.mxu0 0.0
        %745 = vmatprep.subr.mxu0 0.0
        %746 = vmatpush1.msra.mxu0 0.0
        %747 = vmatprep.subr.mxu0 0.0
        %748 = vmatpush1.msra.mxu0 0.0
        %749 = vmatprep.subr.mxu0 0.0
        %750 = vmatpush1.msra.mxu0 0.0
        %751 = vmatprep.subr.mxu0 0.0
        %752 = vmatpush1.msra.mxu0 0.0
        %753 = vmatprep.subr.mxu0 0.0
        %754 = vmatpush1.msra.mxu0 0.0
        %755 = vmatprep.subr.mxu0 0.0
        %756 = vmatpush1.msra.mxu0 0.0
        %757 = vmatprep.subr.mxu0 0.0
        %758 = vmatpush1.msra.mxu0 0.0
        %759 = vmatprep.subr.mxu0 0.0
        %760 = vmatpush1.msra.mxu0 0.0
        %761 = vmatprep.subr.mxu0 0.0
        %762 = vmatpush1.msra.mxu0 0.0
        %763 = vmatprep.subr.mxu0 0.0
        %764 = vmatpush1.msra.mxu0 0.0
        %765 = vmatprep.subr.mxu0 0.0
        %766 = vmatpush1.msra.mxu0 0.0
        %767 = vmatprep.subr.mxu0 0.0
        %768 = vmatpush1.msra.mxu0 0.0
        %769 = vmatprep.subr.mxu0 0.0
        %770 = vmatpush1.msra.mxu0 %v431
        %771 = vmatprep.subr.mxu0 0.0
        %772 = vmatpush1.msra.mxu0 %v426
        %773 = vmatprep.subr.mxu0 0.0
        %774 = vmatpush2.msra.mxu0 0.0
        %775 = vmatprep.subr.mxu0 0.0
        %776 = vmatpush2.msra.mxu0 0.0
        %777 = vmatprep.subr.mxu0 0.0
        %778 = vmatpush2.msra.mxu0 0.0
        %779 = vmatprep.subr.mxu0 0.0
        %780 = vmatpush2.msra.mxu0 0.0
        %781 = vmatprep.subr.mxu0 0.0
        %782 = vmatpush2.msra.mxu0 0.0
        %783 = vmatprep.subr.mxu0 0.0
        %784 = vmatpush2.msra.mxu0 0.0
        %785 = vmatprep.subr.mxu0 0.0
        %786 = vmatpush2.msra.mxu0 0.0
        %787 = vmatprep.subr.mxu0 0.0
        %788 = vmatpush2.msra.mxu0 0.0
        %789 = vmatprep.subr.mxu0 0.0
        %790 = vmatpush2.msra.mxu0 0.0
        %791 = vmatprep.subr.mxu0 0.0
        %792 = vmatpush2.msra.mxu0 0.0
        %793 = vmatprep.subr.mxu0 0.0
        %794 = vmatpush2.msra.mxu0 0.0
        %795 = vmatprep.subr.mxu0 0.0
        %796 = vmatpush2.msra.mxu0 0.0
        %797 = vmatprep.subr.mxu0 0.0
        %798 = vmatpush2.msra.mxu0 0.0
        %799 = vmatprep.subr.mxu0 0.0
        %800 = vmatpush2.msra.mxu0 0.0
        %801 = vmatprep.subr.mxu0 0.0
        %802 = vmatpush2.msra.mxu0 0.0
        %803 = vmatprep.subr.mxu0 0.0
        %804 = vmatpush2.msra.mxu0 0.0
        %805 = vmatprep.mubr.f32.mxu0 0.0
        %806 = vmatmul.mubr.f32.gmra.mxu0 %v436
        %v807 = vpop.f32.mrf.mxu0
        %v808 = vadd.f32 0.0, %v807
        %v809 = vpop.f32.mrf.mxu0
        %810 = vmatprep.mubr.f32.mxu0 0.0
        %811 = vmatmul.mubr.f32.gmra.mxu0 %v439
        %v812 = vpop.f32.mrf.mxu0
        %v813 = vadd.f32 0.0, %v812
        %v814 = vpop.f32.mrf.mxu0
        %815 = vdwg.mxu0
        %v816 = vmul.f32 %v508, %v508
        %v817 = vmul.f32 %v513, %v513
        %v818 = vmul.f32 %v583, %v583
        %v819 = vmul.f32 %v588, %v588
        %v820 = vmul.f32 %v508, %v583
        %v821 = vmul.f32 %v513, %v588
        %v822 = vsub.f32 %v658, %v816
        %v823 = vsub.f32 %v663, %v817
        %v824 = vsub.f32 %v733, %v818
        %v825 = vsub.f32 %v738, %v819
        %v826 = vsub.f32 %v808, %v820
        %v827 = vsub.f32 %v813, %v821
        %v828 = vmul.f32 %v820, 2.0
        %v829 = vmul.f32 %v821, 2.0
        %v830 = vadd.f32 %v828, 0.0001
        %v831 = vadd.f32 %v829, 0.0001
        %v832 = vmul.f32 %v826, 2.0
        %v833 = vmul.f32 %v827, 2.0
        %v834 = vadd.f32 %v832, 0.0009
        %v835 = vadd.f32 %v833, 0.0009
        %v836 = vmul.f32 %v830, %v834
        %v837 = vmul.f32 %v831, %v835
        %v838 = vadd.f32 %v816, %v818
        %v839 = vadd.f32 %v817, %v819
        %v840 = vadd.f32 %v838, 0.0001
        %v841 = vadd.f32 %v839, 0.0001
        %v842 = vadd.f32 %v822, %v824
        %v843 = vadd.f32 %v823, %v825
        %v844 = vadd.f32 %v842, 0.0009
        %v845 = vadd.f32 %v843, 0.0009
        %v846 = vmul.f32 %v840, %v844
        %v847 = vmul.f32 %v841, %v845
        %v848 = vrcp.pop %v846
        %v849 = vmul.f32 %v836, %v848
        %v850 = vrcp.pop %v847
        %v851 = vmul.f32 %v837, %v850
        %v852 = vsel %vm271, %v849, 0.0
        %v853 = vsel %vm272, %v851, 0.0
        %v854 = vadd.f32 %v852, %v853
        %855 = vadd.xlane.f32.xlu0 %v854
        %v856 = vpop.xlane.xlu0 %855
        %v857 = vrot.slane %v856, 4
        %v858 = vadd.f32 %v856, %v857
        %v859 = vrot.slane %v858, 2
        %v860 = vadd.f32 %v858, %v859
        %v861 = vrot.slane %v860, 1
        %v862 = vadd.f32 %v860, %v861
        %s863 = vtos %v862
        %v864 = vstv %s863
        %865 = vst [vmem:[%s256] sm:$0xff] %v864
        %p866 = scmp.lt.s32.totalorder %s17, 1
        %s867 = scalar_select %p866, %s17, 1
        %s868 = smul.addr %s867, 8
        %s869 = scalar_lea.vmem %s5, %s868
        // Predicated region
        $region45: #{ssim_loss.1} parent=39 // pred_check
          %p870 = pneg %p150
        $region46: #{ssim_loss.1} parent=39 // pred_check_branch
          %872 = sbr.rel (%p870) target = $region48
        $region47: #{ssim_loss.1} parent=39 // pred_region
          _
        $region48: #{ssim_loss.1} parent=39 // pred_fallthru
          _
      $region40: #{ssim_loss.1} parent=5 // pred_fallthru
        _
      %p873 = scmp.le.s32.totalorder 2, %s12
      // Predicated region
      $region49: #{ssim_loss.1} parent=5 // pred_check
        %p874 = pneg %p873
      $region50: #{ssim_loss.1} parent=5 // pred_check_branch
        %876 = sbr.rel (%p874) target = $region52
      $region51: #{ssim_loss.1} parent=5 // pred_region
        %s877 = ssub.s32 %s12, 2
        // Predicated region
        $region53: #{ssim_loss.1} parent=51 // pred_check
          %p878 = pneg %p156
        $region54: #{ssim_loss.1} parent=51 // pred_check_branch
          %880 = sbr.rel (%p878) target = $region56
        $region55: #{ssim_loss.1} parent=51 // pred_region
          %p881 = scmp.lt.s32.totalorder %s18, 1
          %s882 = scalar_select %p881, %s18, 1
          %s883 = smul.addr %s882, 8
          %s884 = scalar_lea.vmem %s5, %s883
        $region56: #{ssim_loss.1} parent=51 // pred_fallthru
          _
      $region52: #{ssim_loss.1} parent=5 // pred_fallthru
        _
    $region6: #{ssim_loss.1} parent=1 // loop_footer
      %s16 = sadd.s32 1, %s12
    $region7: #{ssim_loss.1} parent=1 // loop_footer_branch
      %11 = sbr.rel target = $region3
    $region8: #{ssim_loss.1} parent=1 // loop_exit
      _
    %885 = vsyncpa [#allocation3], 1
    %s886 = scalar_lea.sflag [#allocation3], 1
    %887 = vsyncpa %s886, 1

</llo_original>
